<compile_context>
chip_gen: v5e
topology: v5e:2x2
jax: 0.10.0
libtpu: 0.0.40
codegen_flags: <defaults>
</compile_context>

<pallas_src>
import functools

import jax
import jax.numpy as jnp
from jax.experimental import pallas as pl
from jax.experimental.pallas import tpu as pltpu

IN_FEATURES = 784
LANE = 128
SUBLANE = 8
TM_CAP = 2048  # bf16 pipeline footprint at 2048 rows ~= 9.4 MiB -> fits all gens


def _round_up(x, m):
    return ((x + m - 1) // m) * m


def _linear_kernel(x_ref, w_ref, b_ref, o_ref):
    # x_ref: (TM, 784) bf16 tile; w_ref: (784, C_pad) bf16 (resident);
    # b_ref: (1, C_pad) f32 (resident); o_ref: (TM, C_pad) f32.
    acc = jnp.dot(x_ref[...], w_ref[...], preferred_element_type=jnp.float32)
    o_ref[...] = (acc + b_ref[...]).astype(o_ref.dtype)


def prepare_params(weight, bias, compute_dtype=jnp.bfloat16):
    """One-time param prep (hoisted out of the hot path).

    weight: (C, 784) in PyTorch nn.Linear layout; bias: (C,).
    Returns weight pre-transposed + cast to `compute_dtype` as (784, C_pad)
    and bias as f32 (1, C_pad), with C padded to a lane-dense multiple of 128.
    """
    num_classes, in_features = weight.shape
    c_pad = _round_up(num_classes, LANE)
    w_t = jnp.zeros((in_features, c_pad), compute_dtype)
    w_t = w_t.at[:, :num_classes].set(weight.T.astype(compute_dtype))
    b2d = jnp.zeros((1, c_pad), jnp.float32)
    b2d = b2d.at[0, :num_classes].set(bias.astype(jnp.float32))
    return w_t, b2d


@functools.partial(jax.jit, static_argnames=("num_classes",))
def model_no_conv1_forward(x_nchw, w_t, b2d, *, num_classes):
    """x_nchw: (B, 1, 28, 28), ideally bf16; w_t: (784, C_pad) bf16; b2d: (1, C_pad) f32."""
    B = x_nchw.shape[0]
    in_features, c_pad = w_t.shape

    # nn.Flatten (contiguous reshape, no copy).
    x_flat = x_nchw.reshape(B, in_features)

    # bf16 activation path: fastest when x is already bf16 in HBM (cast done
    # by the caller / fused into the producer).  Casting here is still correct.
    if x_flat.dtype != w_t.dtype:
        x_flat = x_flat.astype(w_t.dtype)

    # Pad batch only to a sublane multiple (8), and only when needed.  Ragged
    # last *tiles* are handled by Pallas partial blocks: OOB output rows are
    # masked and garbage input rows only affect rows we slice off below.
    b_pad = _round_up(B, SUBLANE)
    if b_pad != B:
        x_flat = jnp.pad(x_flat, ((0, b_pad - B), (0, 0)))

    # Batch tile: cap at TM_CAP, but aim for >= 2 grid steps so v7x's two
    # TensorCores both get work under dimension_semantics=("parallel",).
    tm = min(TM_CAP, _round_up(max(pl.cdiv(B, 2), 1), SUBLANE))
    grid = (pl.cdiv(b_pad, tm),)

    x_bytes = b_pad * in_features * jnp.dtype(x_flat.dtype).itemsize
    w_bytes = in_features * c_pad * jnp.dtype(w_t.dtype).itemsize
    b_bytes = c_pad * jnp.dtype(b2d.dtype).itemsize
    o_bytes = b_pad * c_pad * 4  # f32 output
    cost = pl.CostEstimate(
        flops=2 * b_pad * in_features * c_pad,
        transcendentals=0,
        bytes_accessed=x_bytes + w_bytes + b_bytes + o_bytes,
    )

    out = pl.pallas_call(
        _linear_kernel,
        out_shape=jax.ShapeDtypeStruct((b_pad, c_pad), jnp.float32),
        grid=grid,
        in_specs=[
            pl.BlockSpec((tm, in_features), lambda i: (i, 0)),     # x tile (pipelined)
            pl.BlockSpec((in_features, c_pad), lambda i: (0, 0)),  # weight (resident)
            pl.BlockSpec((1, c_pad), lambda i: (0, 0)),            # bias (resident)
        ],
        out_specs=pl.BlockSpec((tm, c_pad), lambda i: (i, 0)),
        compiler_params=pltpu.CompilerParams(
            dimension_semantics=("parallel",),
            vmem_limit_bytes=32 << 20,  # headroom over v5e's 16 MiB default scoped VMEM
        ),
        cost_estimate=cost,
    )(x_flat, w_t, b2d)

    # Drop batch padding and lane padding.
    return out[:B, :num_classes]


def init_params(key, in_features=IN_FEATURES, num_classes=10):
    # Deterministic init mimicking nn.Linear default (uniform +/- 1/sqrt(fan_in)),
    # in the PyTorch (C, 784) layout.
    kw, kb = jax.random.split(key)
    bound = 1.0 / jnp.sqrt(jnp.float32(in_features))
    weight = jax.random.uniform(kw, (num_classes, in_features), jnp.float32, -bound, bound)
    bias = jax.random.uniform(kb, (num_classes,), jnp.float32, -bound, bound)
    return weight, bias


if __name__ == "__main__":
    key = jax.random.PRNGKey(0)
    k_x, k_p = jax.random.split(key)

    B, C_in, H, W = 2, 1, 28, 28          # 1*28*28 = 784, matches Linear(784, .)
    num_classes = 10

    x_f32 = jax.random.normal(k_x, (B, C_in, H, W), jnp.float32)
    weight, bias = init_params(k_p, in_features=C_in * H * W, num_classes=num_classes)

    # One-time param prep (transpose + lane padding + bf16 cast) -- not hot path.
    w_t, b2d = prepare_params(weight, bias)

    # bf16 activations in HBM (cast once, outside the kernel hot path).
    x = x_f32.astype(jnp.bfloat16)

    out = model_no_conv1_forward(x, w_t, b2d, num_classes=num_classes)
    out = jax.block_until_ready(out)
    assert out.shape == (B, num_classes)

    # Tight check: same bf16-input / f32-accumulate math as the kernel.
    xb = x.reshape(B, -1).astype(jnp.float32)
    wb = w_t[:, :num_classes].astype(jnp.float32)
    ref_bf16 = xb @ wb + bias
    assert jnp.allclose(out, ref_bf16, atol=1e-3, rtol=1e-3)

    # Loose check: original f32 module semantics (differs only by bf16 rounding of inputs).
    ref_f32 = x_f32.reshape(B, -1) @ weight.T + bias
    assert jnp.allclose(out, ref_f32, atol=5e-2, rtol=5e-2)

    print("KERNEL_OK")
</pallas_src>

<mosaic_0001>
module attributes {stable_mosaic.version = 11 : i64} {
  func.func @_linear_kernel(%arg0: i32, %arg1: memref<8x784xbf16, #tpu.memory_space<vmem>>, %arg2: memref<784x128xbf16, #tpu.memory_space<vmem>>, %arg3: memref<1x128xf32, #tpu.memory_space<vmem>>, %arg4: memref<8x128xf32, #tpu.memory_space<vmem>>) attributes {dimension_semantics = [#tpu.dimension_semantics<parallel>], iteration_bounds = array<i64: 1>, scalar_prefetch = 0 : i64, scratch_operands = 0 : i64, tpu.core_type = #tpu.core_type<tc>, window_params = [{transform_indices = @transform_0, window_bounds = array<i64: 8, 784>}, {pipeline_mode = #tpu.pipeline_mode<synchronous>, transform_indices = @transform_1, window_bounds = array<i64: 784, 128>}, {pipeline_mode = #tpu.pipeline_mode<synchronous>, transform_indices = @transform_2, window_bounds = array<i64: 1, 128>}, {transform_indices = @transform_3, window_bounds = array<i64: 8, 128>}]} {
    %c0 = arith.constant 0 : index
    %c0_0 = arith.constant 0 : index
    %0 = vector.load %arg1[%c0, %c0_0] : memref<8x784xbf16, #tpu.memory_space<vmem>>, vector<8x784xbf16>
    %c0_1 = arith.constant 0 : index
    %c0_2 = arith.constant 0 : index
    %1 = vector.load %arg2[%c0_1, %c0_2] : memref<784x128xbf16, #tpu.memory_space<vmem>>, vector<784x128xbf16>
    %cst = arith.constant dense<0.000000e+00> : vector<8x128xf32>
    %2 = tpu.matmul %0, %1, %cst {dimension_numbers = #tpu.dot_dimension_numbers<[1], [0], [0], [1], [0, 0, 1, 1], [], []>} : vector<8x784xbf16>, vector<784x128xbf16>, vector<8x128xf32> -> vector<8x128xf32>
    %c0_3 = arith.constant 0 : index
    %c0_4 = arith.constant 0 : index
    %3 = vector.load %arg3[%c0_3, %c0_4] : memref<1x128xf32, #tpu.memory_space<vmem>>, vector<1x128xf32>
    %4 = vector.broadcast %3 : vector<1x128xf32> to vector<8x128xf32>
    %5 = arith.addf %2, %4 : vector<8x128xf32>
    %c0_5 = arith.constant 0 : index
    %c0_6 = arith.constant 0 : index
    %6 = vector.load %arg4[%c0_5, %c0_6] : memref<8x128xf32, #tpu.memory_space<vmem>>, vector<8x128xf32>
    tpu.vector_store %arg4[%c0_5, %c0_6], %5 {strides = array<i32>} : memref<8x128xf32, #tpu.memory_space<vmem>>, vector<8x128xf32>,
    return
  }
  func.func @transform_0(%arg0: i32) -> (i32, i32) {
    %c0_i32 = arith.constant 0 : i32
    %c0_i32_0 = arith.constant 0 : i32
    return %arg0, %c0_i32 : i32, i32
  }
  func.func @transform_1(%arg0: i32) -> (i32, i32) {
    %c0_i32 = arith.constant 0 : i32
    %c0_i32_0 = arith.constant 0 : i32
    %c0_i32_1 = arith.constant 0 : i32
    return %c0_i32, %c0_i32_0 : i32, i32
  }
  func.func @transform_2(%arg0: i32) -> (i32, i32) {
    %c0_i32 = arith.constant 0 : i32
    %c0_i32_0 = arith.constant 0 : i32
    %c0_i32_1 = arith.constant 0 : i32
    return %c0_i32, %c0_i32_0 : i32, i32
  }
  func.func @transform_3(%arg0: i32) -> (i32, i32) {
    %c0_i32 = arith.constant 0 : i32
    %c0_i32_0 = arith.constant 0 : i32
    return %arg0, %c0_i32 : i32, i32
  }
}

</mosaic_0001>

<llo_original>
// kernel: model_no_conv1_forward.1
$region0: #{model_no_conv1_forward.1}
  #allocation0 [shape = 'u32[]', space=smem, size = 0x4, offset = 0x4, fixed_abs, tag = 'smem constant byte address 0x4 - core index']
  #allocation1 [shape = 'u32[72,128]{1,0:T(1,128)}', space=vmem, size = 0x9000, scoped, tag = 'internal scratch']
  %s0 = inlined_call_operand.vmem [shape: bf16[8,784], index: 0, kind: input, shape index: {}]
  %s1 = inlined_call_operand.hbm [shape: bf16[784,128], index: 1, kind: input, shape index: {}]
  %s2 = inlined_call_operand.vmem [shape: f32[1,128], index: 2, kind: input, shape index: {}]
  %s3 = inlined_call_operand.vmem [shape: f32[8,128], index: 3, kind: output, shape index: {}]
  %s4 = sld [smem:[#allocation0]]
  $region26: #{model_no_conv1_forward.1} parent=0
    _
  %s6 = ssub.s32 1, %s4
  %s7 = scalar_select 0, %s6, %s4
  $region1: #{model_no_conv1_forward.1} parent=0
    #allocation2 [shape = 'u8[200704]{0}', space=vmem, size = 0x31000, scoped, tag = 'input window, operand 1, single buffered']
    #allocation3 [shape = 's32[1]{0}', space=sflag, size = 0x4, scoped, tag = 'scoped memory for model_no_conv1_forward.1']
    %8 = vsyncpa [#allocation3], 0
    // Predicated region
    $region2: #{model_no_conv1_forward.1} parent=1 // pred_check
      _
    $region3: #{model_no_conv1_forward.1} parent=1 // pred_check_branch
      %10 = sbr.rel (0) target = $region5
    $region4: #{model_no_conv1_forward.1} parent=1 // pred_region
      _
    $region5: #{model_no_conv1_forward.1} parent=1 // pred_fallthru
      _
    // Predicated region
    $region6: #{model_no_conv1_forward.1} parent=1 // pred_check
      _
    $region7: #{model_no_conv1_forward.1} parent=1 // pred_check_branch
      %12 = sbr.rel (0) target = $region9
    $region8: #{model_no_conv1_forward.1} parent=1 // pred_region
      %14 = vsyncadd [#allocation3], 0
      %s15 = sshll.u32 %s1, 4
      %s16 = int_to_ptr.hbm [resolvable:$true] %s15
      %s17 = sshll.u32 [#allocation2], 4
      %s18 = int_to_ptr.vmem [resolvable:$true] %s17
      %23 = dma.hbm_to_vmem [thread:$0]  %s16, 6272, %s18, [#allocation3], 64, 64, 4
    $region9: #{model_no_conv1_forward.1} parent=1 // pred_fallthru
      _
    // Predicated region
    $region10: #{model_no_conv1_forward.1} parent=1 // pred_check
      _
    $region11: #{model_no_conv1_forward.1} parent=1 // pred_check_branch
      %25 = sbr.rel (0) target = $region13
    $region12: #{model_no_conv1_forward.1} parent=1 // pred_region
      _
    $region13: #{model_no_conv1_forward.1} parent=1 // pred_fallthru
      _
    // Predicated region
    $region14: #{model_no_conv1_forward.1} parent=1 // pred_check
      _
    $region15: #{model_no_conv1_forward.1} parent=1 // pred_check_branch
      %27 = sbr.rel (0) target = $region17
    $region16: #{model_no_conv1_forward.1} parent=1 // pred_region
      %29 = dma.done [#allocation3], 6272
    $region17: #{model_no_conv1_forward.1} parent=1 // pred_fallthru
      _
    %v31 = vld [vmem:[%s0] sm:$0xff]
    %v32 = vld [vmem:[%s0 + $0x8] sm:$0xff]
    %v33 = vld [vmem:[%s0 + $0x10] sm:$0xff]
    %v34 = vld [vmem:[%s0 + $0x18] sm:$0xf]
    %v35 = vld [vmem:[#allocation2] sm:$0xf]
    %v36 = vld [vmem:[#allocation2 + $0x4] sm:$0xf]
    %v37 = vld [vmem:[#allocation2 + $0x8] sm:$0xf]
    %v38 = vld [vmem:[#allocation2 + $0xc] sm:$0xf]
    %v39 = vld [vmem:[#allocation2 + $0x10] sm:$0xf]
    %v40 = vld [vmem:[#allocation2 + $0x14] sm:$0xf]
    %v41 = vld [vmem:[#allocation2 + $0x18] sm:$0xf]
    %v42 = vld [vmem:[#allocation2 + $0x1c] sm:$0xf]
    %v43 = vld [vmem:[#allocation2 + $0x20] sm:$0xf]
    %v44 = vld [vmem:[#allocation2 + $0x24] sm:$0xf]
    %v45 = vld [vmem:[#allocation2 + $0x28] sm:$0xf]
    %v46 = vld [vmem:[#allocation2 + $0x2c] sm:$0xf]
    %v47 = vld [vmem:[#allocation2 + $0x30] sm:$0xf]
    %v48 = vld [vmem:[#allocation2 + $0x34] sm:$0xf]
    %v49 = vld [vmem:[#allocation2 + $0x38] sm:$0xf]
    %v50 = vld [vmem:[#allocation2 + $0x3c] sm:$0xf]
    %v51 = vld [vmem:[#allocation2 + $0x40] sm:$0xf]
    %v52 = vld [vmem:[#allocation2 + $0x44] sm:$0xf]
    %v53 = vld [vmem:[#allocation2 + $0x48] sm:$0xf]
    %v54 = vld [vmem:[#allocation2 + $0x4c] sm:$0xf]
    %v55 = vld [vmem:[#allocation2 + $0x50] sm:$0xf]
    %v56 = vld [vmem:[#allocation2 + $0x54] sm:$0xf]
    %v57 = vld [vmem:[#allocation2 + $0x58] sm:$0xf]
    %v58 = vld [vmem:[#allocation2 + $0x5c] sm:$0xf]
    %v59 = vld [vmem:[#allocation2 + $0x60] sm:$0xf]
    %v60 = vld [vmem:[#allocation2 + $0x64] sm:$0xf]
    %v61 = vld [vmem:[#allocation2 + $0x68] sm:$0xf]
    %v62 = vld [vmem:[#allocation2 + $0x6c] sm:$0xf]
    %v63 = vld [vmem:[#allocation2 + $0x70] sm:$0xf]
    %v64 = vld [vmem:[#allocation2 + $0x74] sm:$0xf]
    %v65 = vld [vmem:[#allocation2 + $0x78] sm:$0xf]
    %v66 = vld [vmem:[#allocation2 + $0x7c] sm:$0xf]
    %v67 = vld [vmem:[#allocation2 + $0x80] sm:$0xf]
    %v68 = vld [vmem:[#allocation2 + $0x84] sm:$0xf]
    %v69 = vld [vmem:[#allocation2 + $0x88] sm:$0xf]
    %v70 = vld [vmem:[#allocation2 + $0x8c] sm:$0xf]
    %v71 = vld [vmem:[#allocation2 + $0x90] sm:$0xf]
    %v72 = vld [vmem:[#allocation2 + $0x94] sm:$0xf]
    %v73 = vld [vmem:[#allocation2 + $0x98] sm:$0xf]
    %v74 = vld [vmem:[#allocation2 + $0x9c] sm:$0xf]
    %v75 = vld [vmem:[#allocation2 + $0xa0] sm:$0xf]
    %v76 = vld [vmem:[#allocation2 + $0xa4] sm:$0xf]
    %v77 = vld [vmem:[#allocation2 + $0xa8] sm:$0xf]
    %v78 = vld [vmem:[#allocation2 + $0xac] sm:$0xf]
    %v79 = vld [vmem:[#allocation2 + $0xb0] sm:$0xf]
    %v80 = vld [vmem:[#allocation2 + $0xb4] sm:$0xf]
    %v81 = vld [vmem:[#allocation2 + $0xb8] sm:$0xf]
    %v82 = vld [vmem:[#allocation2 + $0xbc] sm:$0xf]
    %v83 = vld [vmem:[#allocation2 + $0xc0] sm:$0xf]
    %v84 = vld [vmem:[#allocation2 + $0xc4] sm:$0xf]
    %v85 = vld [vmem:[#allocation2 + $0xc8] sm:$0xf]
    %v86 = vld [vmem:[#allocation2 + $0xcc] sm:$0xf]
    %v87 = vld [vmem:[#allocation2 + $0xd0] sm:$0xf]
    %v88 = vld [vmem:[#allocation2 + $0xd4] sm:$0xf]
    %v89 = vld [vmem:[#allocation2 + $0xd8] sm:$0xf]
    %v90 = vld [vmem:[#allocation2 + $0xdc] sm:$0xf]
    %v91 = vld [vmem:[#allocation2 + $0xe0] sm:$0xf]
    %v92 = vld [vmem:[#allocation2 + $0xe4] sm:$0xf]
    %v93 = vld [vmem:[#allocation2 + $0xe8] sm:$0xf]
    %v94 = vld [vmem:[#allocation2 + $0xec] sm:$0xf]
    %v95 = vld [vmem:[#allocation2 + $0xf0] sm:$0xf]
    %v96 = vld [vmem:[#allocation2 + $0xf4] sm:$0xf]
    %v97 = vld [vmem:[#allocation2 + $0xf8] sm:$0xf]
    %v98 = vld [vmem:[#allocation2 + $0xfc] sm:$0xf]
    %v99 = vld [vmem:[#allocation2 + $0x100] sm:$0xf]
    %v100 = vld [vmem:[#allocation2 + $0x104] sm:$0xf]
    %v101 = vld [vmem:[#allocation2 + $0x108] sm:$0xf]
    %v102 = vld [vmem:[#allocation2 + $0x10c] sm:$0xf]
    %v103 = vld [vmem:[#allocation2 + $0x110] sm:$0xf]
    %v104 = vld [vmem:[#allocation2 + $0x114] sm:$0xf]
    %v105 = vld [vmem:[#allocation2 + $0x118] sm:$0xf]
    %v106 = vld [vmem:[#allocation2 + $0x11c] sm:$0xf]
    %v107 = vld [vmem:[#allocation2 + $0x120] sm:$0xf]
    %v108 = vld [vmem:[#allocation2 + $0x124] sm:$0xf]
    %v109 = vld [vmem:[#allocation2 + $0x128] sm:$0xf]
    %v110 = vld [vmem:[#allocation2 + $0x12c] sm:$0xf]
    %v111 = vld [vmem:[#allocation2 + $0x130] sm:$0xf]
    %v112 = vld [vmem:[#allocation2 + $0x134] sm:$0xf]
    %v113 = vld [vmem:[#allocation2 + $0x138] sm:$0xf]
    %v114 = vld [vmem:[#allocation2 + $0x13c] sm:$0xf]
    %v115 = vld [vmem:[#allocation2 + $0x140] sm:$0xf]
    %v116 = vld [vmem:[#allocation2 + $0x144] sm:$0xf]
    %v117 = vld [vmem:[#allocation2 + $0x148] sm:$0xf]
    %v118 = vld [vmem:[#allocation2 + $0x14c] sm:$0xf]
    %v119 = vld [vmem:[#allocation2 + $0x150] sm:$0xf]
    %v120 = vld [vmem:[#allocation2 + $0x154] sm:$0xf]
    %v121 = vld [vmem:[#allocation2 + $0x158] sm:$0xf]
    %v122 = vld [vmem:[#allocation2 + $0x15c] sm:$0xf]
    %v123 = vld [vmem:[#allocation2 + $0x160] sm:$0xf]
    %v124 = vld [vmem:[#allocation2 + $0x164] sm:$0xf]
    %v125 = vld [vmem:[#allocation2 + $0x168] sm:$0xf]
    %v126 = vld [vmem:[#allocation2 + $0x16c] sm:$0xf]
    %v127 = vld [vmem:[#allocation2 + $0x170] sm:$0xf]
    %v128 = vld [vmem:[#allocation2 + $0x174] sm:$0xf]
    %v129 = vld [vmem:[#allocation2 + $0x178] sm:$0xf]
    %v130 = vld [vmem:[#allocation2 + $0x17c] sm:$0xf]
    %v131 = vld [vmem:[#allocation2 + $0x180] sm:$0xf]
    %v132 = vld [vmem:[#allocation2 + $0x184] sm:$0xf]
    %v133 = vld [vmem:[%s2] sm:$0x1]
    %v135 = vperm.slane %v133, 0
    %v141 = vunpack.c.l.b16 %v31
    %v142 = vunpack.c.h.b16 %v31
    %v143 = vunpack.c.l.b16 %v32
    %v144 = vunpack.c.h.b16 %v32
    %v145 = vunpack.c.l.b16 %v33
    %v146 = vunpack.c.h.b16 %v33
    %v147 = vunpack.c.l.b16 %v34
    %v148 = vpack.c.b16 %v141, %v141
    %v149 = vpack.c.b16 %v142, %v142
    %v150 = vpack.c.b16 %v143, %v143
    %v151 = vpack.c.b16 %v144, %v144
    %v152 = vpack.c.b16 %v145, %v145
    %v153 = vpack.c.b16 %v146, %v146
    %v154 = vpack.c.b16 %v147, %v147
    %v259 = vunpack.c.l.b16 %v35
    %v260 = vunpack.c.l.b16 %v36
    %v261 = vunpack.c.l.b16 %v37
    %v262 = vunpack.c.l.b16 %v38
    %v263 = vunpack.c.l.b16 %v39
    %v264 = vunpack.c.l.b16 %v40
    %v265 = vunpack.c.l.b16 %v41
    %v266 = vunpack.c.l.b16 %v42
    %v267 = vunpack.c.l.b16 %v43
    %v268 = vunpack.c.l.b16 %v44
    %v269 = vunpack.c.l.b16 %v45
    %v270 = vunpack.c.l.b16 %v46
    %v271 = vunpack.c.l.b16 %v47
    %v272 = vunpack.c.l.b16 %v48
    %v273 = vunpack.c.l.b16 %v49
    %v274 = vunpack.c.l.b16 %v50
    %v275 = vunpack.c.l.b16 %v51
    %v276 = vunpack.c.l.b16 %v52
    %v277 = vunpack.c.l.b16 %v53
    %v278 = vunpack.c.l.b16 %v54
    %v279 = vunpack.c.l.b16 %v55
    %v280 = vunpack.c.l.b16 %v56
    %v281 = vunpack.c.l.b16 %v57
    %v282 = vunpack.c.l.b16 %v58
    %v283 = vunpack.c.l.b16 %v59
    %v284 = vunpack.c.l.b16 %v60
    %v285 = vunpack.c.l.b16 %v61
    %v286 = vunpack.c.l.b16 %v62
    %v287 = vunpack.c.l.b16 %v63
    %v288 = vunpack.c.l.b16 %v64
    %v289 = vunpack.c.l.b16 %v65
    %v290 = vunpack.c.l.b16 %v66
    %v291 = vunpack.c.l.b16 %v67
    %v292 = vunpack.c.l.b16 %v68
    %v293 = vunpack.c.l.b16 %v69
    %v294 = vunpack.c.l.b16 %v70
    %v295 = vunpack.c.l.b16 %v71
    %v296 = vunpack.c.l.b16 %v72
    %v297 = vunpack.c.l.b16 %v73
    %v298 = vunpack.c.l.b16 %v74
    %v299 = vunpack.c.l.b16 %v75
    %v300 = vunpack.c.l.b16 %v76
    %v301 = vunpack.c.l.b16 %v77
    %v302 = vunpack.c.l.b16 %v78
    %v303 = vunpack.c.l.b16 %v79
    %v304 = vunpack.c.l.b16 %v80
    %v305 = vunpack.c.l.b16 %v81
    %v306 = vunpack.c.l.b16 %v82
    %v307 = vunpack.c.l.b16 %v83
    %v308 = vunpack.c.l.b16 %v84
    %v309 = vunpack.c.l.b16 %v85
    %v310 = vunpack.c.l.b16 %v86
    %v311 = vunpack.c.l.b16 %v87
    %v312 = vunpack.c.l.b16 %v88
    %v313 = vunpack.c.l.b16 %v89
    %v314 = vunpack.c.l.b16 %v90
    %v315 = vunpack.c.l.b16 %v91
    %v316 = vunpack.c.l.b16 %v92
    %v317 = vunpack.c.l.b16 %v93
    %v318 = vunpack.c.l.b16 %v94
    %v319 = vunpack.c.l.b16 %v95
    %v320 = vunpack.c.l.b16 %v96
    %v321 = vunpack.c.l.b16 %v97
    %v322 = vunpack.c.l.b16 %v98
    %v323 = vunpack.c.l.b16 %v99
    %v324 = vunpack.c.l.b16 %v100
    %v325 = vunpack.c.l.b16 %v101
    %v326 = vunpack.c.l.b16 %v102
    %v327 = vunpack.c.l.b16 %v103
    %v328 = vunpack.c.l.b16 %v104
    %v329 = vunpack.c.l.b16 %v105
    %v330 = vunpack.c.l.b16 %v106
    %v331 = vunpack.c.l.b16 %v107
    %v332 = vunpack.c.l.b16 %v108
    %v333 = vunpack.c.l.b16 %v109
    %v334 = vunpack.c.l.b16 %v110
    %v335 = vunpack.c.l.b16 %v111
    %v336 = vunpack.c.l.b16 %v112
    %v337 = vunpack.c.l.b16 %v113
    %v338 = vunpack.c.l.b16 %v114
    %v339 = vunpack.c.l.b16 %v115
    %v340 = vunpack.c.l.b16 %v116
    %v341 = vunpack.c.l.b16 %v117
    %v342 = vunpack.c.l.b16 %v118
    %v343 = vunpack.c.l.b16 %v119
    %v344 = vunpack.c.l.b16 %v120
    %v345 = vunpack.c.l.b16 %v121
    %v346 = vunpack.c.l.b16 %v122
    %v347 = vunpack.c.l.b16 %v123
    %v348 = vunpack.c.l.b16 %v124
    %v349 = vunpack.c.l.b16 %v125
    %v350 = vunpack.c.l.b16 %v126
    %v351 = vunpack.c.l.b16 %v127
    %v352 = vunpack.c.l.b16 %v128
    %v353 = vunpack.c.l.b16 %v129
    %v354 = vunpack.c.l.b16 %v130
    %v355 = vunpack.c.l.b16 %v131
    %v356 = vunpack.c.l.b16 %v132
    %v357 = vpack.c.b16 %v260, %v259
    %v358 = vpack.c.b16 %v262, %v261
    %v359 = vpack.c.b16 %v264, %v263
    %v360 = vpack.c.b16 %v266, %v265
    %v361 = vpack.c.b16 %v268, %v267
    %v362 = vpack.c.b16 %v270, %v269
    %v363 = vpack.c.b16 %v272, %v271
    %v364 = vpack.c.b16 %v274, %v273
    %v365 = vpack.c.b16 %v276, %v275
    %v366 = vpack.c.b16 %v278, %v277
    %v367 = vpack.c.b16 %v280, %v279
    %v368 = vpack.c.b16 %v282, %v281
    %v369 = vpack.c.b16 %v284, %v283
    %v370 = vpack.c.b16 %v286, %v285
    %v371 = vpack.c.b16 %v288, %v287
    %v372 = vpack.c.b16 %v290, %v289
    %v373 = vpack.c.b16 %v292, %v291
    %v374 = vpack.c.b16 %v294, %v293
    %v375 = vpack.c.b16 %v296, %v295
    %v376 = vpack.c.b16 %v298, %v297
    %v377 = vpack.c.b16 %v300, %v299
    %v378 = vpack.c.b16 %v302, %v301
    %v379 = vpack.c.b16 %v304, %v303
    %v380 = vpack.c.b16 %v306, %v305
    %v381 = vpack.c.b16 %v308, %v307
    %v382 = vpack.c.b16 %v310, %v309
    %v383 = vpack.c.b16 %v312, %v311
    %v384 = vpack.c.b16 %v314, %v313
    %v385 = vpack.c.b16 %v316, %v315
    %v386 = vpack.c.b16 %v318, %v317
    %v387 = vpack.c.b16 %v320, %v319
    %v388 = vpack.c.b16 %v322, %v321
    %v389 = vpack.c.b16 %v324, %v323
    %v390 = vpack.c.b16 %v326, %v325
    %v391 = vpack.c.b16 %v328, %v327
    %v392 = vpack.c.b16 %v330, %v329
    %v393 = vpack.c.b16 %v332, %v331
    %v394 = vpack.c.b16 %v334, %v333
    %v395 = vpack.c.b16 %v336, %v335
    %v396 = vpack.c.b16 %v338, %v337
    %v397 = vpack.c.b16 %v340, %v339
    %v398 = vpack.c.b16 %v342, %v341
    %v399 = vpack.c.b16 %v344, %v343
    %v400 = vpack.c.b16 %v346, %v345
    %v401 = vpack.c.b16 %v348, %v347
    %v402 = vpack.c.b16 %v350, %v349
    %v403 = vpack.c.b16 %v352, %v351
    %v404 = vpack.c.b16 %v354, %v353
    %v405 = vpack.c.b16 %v356, %v355
    %vm455 = vcmask 130048
    %v457 = vsel %vm455, %v154, 0
    %459 = vmatpush.bf16.msra.mxu0 %v364
    %460 = vmatpush.bf16.msra.mxu0 %v363
    %461 = vmatpush.bf16.msra.mxu0 %v362
    %462 = vmatpush.bf16.msra.mxu0 %v361
    %463 = vmatpush.bf16.msra.mxu0 %v360
    %464 = vmatpush.bf16.msra.mxu0 %v359
    %465 = vmatpush.bf16.msra.mxu0 %v358
    %466 = vmatpush.bf16.msra.mxu0 %v357
    %467 = vmatmul.bf16.gmra.mxu0 %v148
    %v468 = vpop.f32.mrf.mxu0
    %v469 = vadd.f32 %v135, %v468
    %v470 = vpop.f32.mrf.mxu0
    %471 = vdwg.mxu0
    %472 = vmatpush.bf16.msra.mxu0 %v372
    %473 = vmatpush.bf16.msra.mxu0 %v371
    %474 = vmatpush.bf16.msra.mxu0 %v370
    %475 = vmatpush.bf16.msra.mxu0 %v369
    %476 = vmatpush.bf16.msra.mxu0 %v368
    %477 = vmatpush.bf16.msra.mxu0 %v367
    %478 = vmatpush.bf16.msra.mxu0 %v366
    %479 = vmatpush.bf16.msra.mxu0 %v365
    %480 = vmatmul.bf16.gmra.mxu0 %v149
    %v481 = vpop.f32.mrf.mxu0
    %v482 = vadd.f32 %v469, %v481
    %v483 = vpop.f32.mrf.mxu0
    %484 = vdwg.mxu0
    %485 = vmatpush.bf16.msra.mxu0 %v380
    %486 = vmatpush.bf16.msra.mxu0 %v379
    %487 = vmatpush.bf16.msra.mxu0 %v378
    %488 = vmatpush.bf16.msra.mxu0 %v377
    %489 = vmatpush.bf16.msra.mxu0 %v376
    %490 = vmatpush.bf16.msra.mxu0 %v375
    %491 = vmatpush.bf16.msra.mxu0 %v374
    %492 = vmatpush.bf16.msra.mxu0 %v373
    %493 = vmatmul.bf16.gmra.mxu0 %v150
    %v494 = vpop.f32.mrf.mxu0
    %v495 = vadd.f32 %v482, %v494
    %v496 = vpop.f32.mrf.mxu0
    %497 = vdwg.mxu0
    %498 = vmatpush.bf16.msra.mxu0 %v388
    %499 = vmatpush.bf16.msra.mxu0 %v387
    %500 = vmatpush.bf16.msra.mxu0 %v386
    %501 = vmatpush.bf16.msra.mxu0 %v385
    %502 = vmatpush.bf16.msra.mxu0 %v384
    %503 = vmatpush.bf16.msra.mxu0 %v383
    %504 = vmatpush.bf16.msra.mxu0 %v382
    %505 = vmatpush.bf16.msra.mxu0 %v381
    %506 = vmatmul.bf16.gmra.mxu0 %v151
    %v507 = vpop.f32.mrf.mxu0
    %v508 = vadd.f32 %v495, %v507
    %v509 = vpop.f32.mrf.mxu0
    %510 = vdwg.mxu0
    %511 = vmatpush.bf16.msra.mxu0 %v396
    %512 = vmatpush.bf16.msra.mxu0 %v395
    %513 = vmatpush.bf16.msra.mxu0 %v394
    %514 = vmatpush.bf16.msra.mxu0 %v393
    %515 = vmatpush.bf16.msra.mxu0 %v392
    %516 = vmatpush.bf16.msra.mxu0 %v391
    %517 = vmatpush.bf16.msra.mxu0 %v390
    %518 = vmatpush.bf16.msra.mxu0 %v389
    %519 = vmatmul.bf16.gmra.mxu0 %v152
    %v520 = vpop.f32.mrf.mxu0
    %v521 = vadd.f32 %v508, %v520
    %v522 = vpop.f32.mrf.mxu0
    %523 = vdwg.mxu0
    %524 = vmatpush.bf16.msra.mxu0 %v404
    %525 = vmatpush.bf16.msra.mxu0 %v403
    %526 = vmatpush.bf16.msra.mxu0 %v402
    %527 = vmatpush.bf16.msra.mxu0 %v401
    %528 = vmatpush.bf16.msra.mxu0 %v400
    %529 = vmatpush.bf16.msra.mxu0 %v399
    %530 = vmatpush.bf16.msra.mxu0 %v398
    %531 = vmatpush.bf16.msra.mxu0 %v397
    %532 = vmatmul.bf16.gmra.mxu0 %v153
    %v533 = vpop.f32.mrf.mxu0
    %v534 = vadd.f32 %v521, %v533
    %v535 = vpop.f32.mrf.mxu0
    %536 = vdwg.mxu0
    %537 = vmatpush.bf16.msra.mxu0 0
    %538 = vmatpush.bf16.msra.mxu0 0
    %539 = vmatpush.bf16.msra.mxu0 0
    %540 = vmatpush.bf16.msra.mxu0 0
    %541 = vmatpush.bf16.msra.mxu0 0
    %542 = vmatpush.bf16.msra.mxu0 0
    %543 = vmatpush.bf16.msra.mxu0 0
    %544 = vmatpush.bf16.msra.mxu0 %v405
    %545 = vmatmul.bf16.gmra.mxu0 %v457
    %v546 = vpop.f32.mrf.mxu0
    %v547 = vadd.f32 %v534, %v546
    %v548 = vpop.f32.mrf.mxu0
    %549 = vdwg.mxu0
    %550 = vst [vmem:[%s3] sm:$0xff] %v547
    // Predicated region
    $region18: #{model_no_conv1_forward.1} parent=1 // pred_check
      _
    $region19: #{model_no_conv1_forward.1} parent=1 // pred_check_branch
      %552 = sbr.rel (0) target = $region21
    $region20: #{model_no_conv1_forward.1} parent=1 // pred_region
      _
    $region21: #{model_no_conv1_forward.1} parent=1 // pred_fallthru
      _
    // Predicated region
    $region22: #{model_no_conv1_forward.1} parent=1 // pred_check
      _
    $region23: #{model_no_conv1_forward.1} parent=1 // pred_check_branch
      %554 = sbr.rel (0) target = $region25
    $region24: #{model_no_conv1_forward.1} parent=1 // pred_region
      _
    $region25: #{model_no_conv1_forward.1} parent=1 // pred_fallthru
      _
    %555 = vsyncpa [#allocation3], 1

</llo_original>
